<compile_context>
chip_gen: v6e
topology: v6e:2x2x1
jax: 0.10.0
libtpu: 0.0.40
codegen_flags: <defaults>
</compile_context>

<pallas_src>
import numpy as np

import jax
import jax.numpy as jnp
from jax.experimental import pallas as pl
from jax.experimental.pallas import tpu as pltpu


# ----------------------------- Pallas kernel ------------------------------
def _resblock_kernel(x_ref, w1_ref, w2_ref, sb_ref, o_ref, h1p_ref):
  # x_ref:   (NB, H+2, W*C) f32   row-padded input, lane-dense (W,C) packed
  # w*_ref:  (3, W*C, W*C)  bf16  banded im2col weights (one per dy tap)
  # sb_ref:  (4, W*C)       f32   folded BN rows: [s1, b1, s2, b2]
  # o_ref:   (NB, H, W*C)         lane-dense output slab
  # h1p_ref: (NB, H+2, W*C) bf16  VMEM staging buffer for the hidden activation
  NB, Hp, WC = x_ref.shape
  H = Hp - 2
  M = NB * H

  # Constant zero halo rows of the staging buffer.  Scratch is uninitialized
  # and persistent per-core, so these must be written at least once per core;
  # two tiny (NB,1,128) stores per step are megacore-safe and cheap.  Written
  # up-front so the dy=0/dy=2 loads below only wait on the interior h1 store.
  zrow = jnp.zeros((NB, 1, WC), jnp.bfloat16)
  h1p_ref[:, 0:1, :] = zrow
  h1p_ref[:, Hp - 1:Hp, :] = zrow

  # Folded BN scale/bias (tiny ref-level row loads, broadcast over M).
  s1 = sb_ref[0:1, :]
  b1 = sb_ref[1:2, :]
  s2 = sb_ref[2:3, :]
  b2 = sb_ref[3:4, :]

  # ---- conv1: three ref-level row-shifted loads (no value-level sublane
  # relayout), bf16 MXU operands, f32 accumulation ----
  x_mid = x_ref[:, 1:H + 1, :].reshape(M, WC)          # f32, reused as residual
  acc1 = jnp.dot(x_ref[:, 0:H, :].astype(jnp.bfloat16).reshape(M, WC),
                 w1_ref[0], preferred_element_type=jnp.float32)
  acc1 += jnp.dot(x_mid.astype(jnp.bfloat16), w1_ref[1],
                  preferred_element_type=jnp.float32)
  acc1 += jnp.dot(x_ref[:, 2:H + 2, :].astype(jnp.bfloat16).reshape(M, WC),
                  w1_ref[2], preferred_element_type=jnp.float32)

  # ---- BN1 (folded) + ReLU, f32 epilogue ----
  h1 = jnp.maximum(acc1 * s1 + b1, 0.0)                # (M, W*C)
  h1b = h1.astype(jnp.bfloat16)

  # ---- conv2 center (dy=1) tap straight from registers: no VMEM round-trip,
  # MXU work for conv2 can start immediately ----
  acc2 = jnp.dot(h1b, w2_ref[1], preferred_element_type=jnp.float32)

  # ---- stage h1 only for the two row-shifted taps (dy = 0, 2); the W halo
  # lives in the banded weights, the row halo is the two zero rows above ----
  h1p_ref[:, 1:H + 1, :] = h1b.reshape(NB, H, WC)

  acc2 += jnp.dot(h1p_ref[:, 0:H, :].reshape(M, WC), w2_ref[0],
                  preferred_element_type=jnp.float32)
  acc2 += jnp.dot(h1p_ref[:, 2:H + 2, :].reshape(M, WC), w2_ref[2],
                  preferred_element_type=jnp.float32)

  # ---- BN2 (folded) + identity residual (original f32 rows) + ReLU ----
  out = jnp.maximum(acc2 * s2 + b2 + x_mid, 0.0)

  o_ref[...] = out.reshape(NB, H, WC).astype(o_ref.dtype)


# ----------------------------- wrapper -------------------------------------
def _images_per_block(n):
  """Generation-aware batch blocking.

  Single-TensorCore chips (v5e, v6e): one grid step with the whole batch
  (maximizes M per matmul, no per-step overhead).  v7x (2 TCs per chip):
  largest divisor of n that keeps a parallel grid of >= 2 steps so both cores
  get work.
  """
  try:
    kind = jax.devices()[0].device_kind.lower()
  except Exception:  # pragma: no cover - non-TPU / query failure
    kind = ""
  multi_tc = ("v7" in kind) or ("7x" in kind)
  if not multi_tc:
    return n
  for nb in range(max(n // 2, 1), 0, -1):
    if n % nb == 0:
      return nb
  return 1


@jax.jit
def residual_block_nchw(x_nchw, params):
  """PyTorch-layout entry point. x_nchw: (N, C, H, W) float32."""
  w1b, w2b, sb = params
  N, C, H, W = x_nchw.shape
  WC = W * C
  Hp = H + 2

  # NCHW -> NHWC, zero-pad rows only (column halo is folded into the banded
  # weights), then flatten (W, C) into one lane-dense axis of width W*C.
  # TODO(synk): at real (HBM-bound) sizes, fold the row padding into the kernel
  #             and keep the lane-dense layout across adjacent layers to avoid
  #             the extra HBM passes from pad/transpose.
  x_nhwc = jnp.transpose(x_nchw, (0, 2, 3, 1))
  xp = jnp.pad(x_nhwc, ((0, 0), (1, 1), (0, 0), (0, 0)))
  xp = xp.reshape(N, Hp, WC)

  nb = _images_per_block(N)
  grid_spec = pltpu.PrefetchScalarGridSpec(
      num_scalar_prefetch=0,
      grid=(N // nb,),
      in_specs=[
          pl.BlockSpec((nb, Hp, WC), lambda n: (n, 0, 0)),
          # Constant-index blocks (weights / folded BN) are never re-DMA'd;
          # at this demo size the dead second pipeline buffer is negligible.
          pl.BlockSpec((3, WC, WC), lambda n: (0, 0, 0)),
          pl.BlockSpec((3, WC, WC), lambda n: (0, 0, 0)),
          pl.BlockSpec((4, WC), lambda n: (0, 0)),
      ],
      out_specs=pl.BlockSpec((nb, H, WC), lambda n: (n, 0, 0)),
      scratch_shapes=[pltpu.VMEM((nb, Hp, WC), jnp.bfloat16)],
  )
  y_flat = pl.pallas_call(
      _resblock_kernel,
      out_shape=jax.ShapeDtypeStruct((N, H, WC), x_nchw.dtype),
      grid_spec=grid_spec,
      compiler_params=pltpu.CompilerParams(
          dimension_semantics=("parallel",)),
  )(xp, w1b, w2b, sb)

  # lane-dense (N, H, W*C) -> NHWC -> NCHW
  return jnp.transpose(y_flat.reshape(N, H, W, C), (0, 3, 1, 2))


# ----------------------- parameter preparation -----------------------------
def _fold_bn(gamma, beta, mean, var, eps=1e-5):
  scale = np.asarray(gamma, np.float32) / np.sqrt(np.asarray(var, np.float32) + eps)
  bias = np.asarray(beta, np.float32) - np.asarray(mean, np.float32) * scale
  return scale, bias


def _pack_banded_conv_weight(w_oihw, width):
  """OIHW (Co,Ci,3,3) -> (3, width*Ci, width*Co) banded matrices (bf16).

  r[dy, wx*Ci+ci, w*Co+co] = W[co, ci, dy, wx-w+1] if |wx-w| <= 1 else 0.
  The dx taps and the zero padding along W are both encoded in the band, so the
  kernel only needs 3 row-shifted, lane-dense matmuls per conv.
  """
  w = np.asarray(w_oihw, np.float32)
  Co, Ci, KH, KW = w.shape
  wt = np.transpose(w, (2, 3, 1, 0))               # (KH, KW, Ci, Co)
  r = np.zeros((KH, width * Ci, width * Co), np.float32)
  for dy in range(KH):
    for dx in range(KW):
      for wpos in range(width):
        wx = wpos + dx - 1
        if 0 <= wx < width:
          r[dy, wx * Ci:(wx + 1) * Ci, wpos * Co:(wpos + 1) * Co] = wt[dy, dx]
  return jnp.asarray(r, dtype=jnp.bfloat16)


def _pack_scale_bias(s1, b1, s2, b2, width):
  """Four per-channel (C,) vectors -> one lane-dense (4, W*C) f32 block."""
  rows = [np.tile(np.asarray(v, np.float32), width) for v in (s1, b1, s2, b2)]
  return jnp.asarray(np.stack(rows, axis=0))


# ----------------------------- reference (pure JAX) ------------------------
def _ref_forward(x_nchw, w1_oihw, w2_oihw, s1, b1, s2, b2):
  dn = ("NCHW", "OIHW", "NCHW")
  y = jax.lax.conv_general_dilated(x_nchw, w1_oihw, (1, 1), "SAME",
                                   dimension_numbers=dn)
  y = y * s1[None, :, None, None] + b1[None, :, None, None]
  y = jnp.maximum(y, 0.0)
  y = jax.lax.conv_general_dilated(y, w2_oihw, (1, 1), "SAME",
                                   dimension_numbers=dn)
  y = y * s2[None, :, None, None] + b2[None, :, None, None]
  return jnp.maximum(y + x_nchw, 0.0)


if __name__ == "__main__":
  # inchannel == outchannel == 8, stride=1, identity shortcut; W*C = 128.
  N, C, H, W = 2, 8, 16, 16
  key = jax.random.PRNGKey(0)
  ks = jax.random.split(key, 8)

  x_nchw = jax.random.normal(ks[0], (N, C, H, W), jnp.float32)

  # Conv weights, PyTorch OIHW shape (Cout, Cin, 3, 3), no bias.
  w1_oihw = 0.1 * jax.random.normal(ks[1], (C, C, 3, 3), jnp.float32)
  w2_oihw = 0.1 * jax.random.normal(ks[2], (C, C, 3, 3), jnp.float32)

  # BatchNorm parameters, folded to scale/bias (running-stat / eval semantics).
  g1 = 1.0 + 0.1 * jax.random.normal(ks[3], (C,), jnp.float32)
  be1 = 0.1 * jax.random.normal(ks[4], (C,), jnp.float32)
  m1 = 0.05 * jnp.arange(C, dtype=jnp.float32)
  v1 = 1.0 + 0.02 * jnp.arange(C, dtype=jnp.float32)
  g2 = 1.0 + 0.1 * jax.random.normal(ks[5], (C,), jnp.float32)
  be2 = 0.1 * jax.random.normal(ks[6], (C,), jnp.float32)
  m2 = -0.03 * jnp.arange(C, dtype=jnp.float32)
  v2 = 1.0 + 0.01 * jnp.arange(C, dtype=jnp.float32)

  s1, b1 = _fold_bn(g1, be1, m1, v1)
  s2, b2 = _fold_bn(g2, be2, m2, v2)

  params = (_pack_banded_conv_weight(w1_oihw, W),
            _pack_banded_conv_weight(w2_oihw, W),
            _pack_scale_bias(s1, b1, s2, b2, W))

  y = residual_block_nchw(x_nchw, params)
  y = jax.block_until_ready(y)

  y_ref = _ref_forward(x_nchw, w1_oihw, w2_oihw,
                       jnp.asarray(s1), jnp.asarray(b1),
                       jnp.asarray(s2), jnp.asarray(b2))
  assert y.shape == (N, C, H, W)
  max_err = float(jnp.max(jnp.abs(y - y_ref)))
  # bf16 MXU operands (f32 accumulation) vs. f32 reference -> relaxed tolerance.
  assert jnp.allclose(y, y_ref, atol=5e-2, rtol=5e-2), max_err

  print("KERNEL_OK")
</pallas_src>

<mosaic_0001>
module attributes {stable_mosaic.version = 11 : i64} {
  func.func @_resblock_kernel(%arg0: i32, %arg1: memref<2x18x128xf32, #tpu.memory_space<vmem>>, %arg2: memref<3x128x128xbf16, #tpu.memory_space<vmem>>, %arg3: memref<3x128x128xbf16, #tpu.memory_space<vmem>>, %arg4: memref<4x128xf32, #tpu.memory_space<vmem>>, %arg5: memref<2x16x128xf32, #tpu.memory_space<vmem>>, %arg6: memref<2x18x128xbf16, #tpu.memory_space<vmem>>) attributes {dimension_semantics = [#tpu.dimension_semantics<parallel>], iteration_bounds = array<i64: 1>, scalar_prefetch = 0 : i64, scratch_operands = 1 : i64, tpu.core_type = #tpu.core_type<tc>, window_params = [{transform_indices = @transform_0, window_bounds = array<i64: 2, 18, 128>}, {pipeline_mode = #tpu.pipeline_mode<synchronous>, transform_indices = @transform_1, window_bounds = array<i64: 3, 128, 128>}, {pipeline_mode = #tpu.pipeline_mode<synchronous>, transform_indices = @transform_2, window_bounds = array<i64: 3, 128, 128>}, {pipeline_mode = #tpu.pipeline_mode<synchronous>, transform_indices = @transform_3, window_bounds = array<i64: 4, 128>}, {transform_indices = @transform_4, window_bounds = array<i64: 2, 16, 128>}]} {
    %cst = arith.constant 0.000000e+00 : bf16
    %0 = vector.broadcast %cst : bf16 to vector<2x1x128xbf16>
    %c0 = arith.constant 0 : index
    %c0_0 = arith.constant 0 : index
    %c0_1 = arith.constant 0 : index
    %1 = vector.load %arg6[%c0, %c0_0, %c0_1] : memref<2x18x128xbf16, #tpu.memory_space<vmem>>, vector<2x1x128xbf16>
    tpu.vector_store %arg6[%c0, %c0_0, %c0_1], %0 {strides = array<i32>} : memref<2x18x128xbf16, #tpu.memory_space<vmem>>, vector<2x1x128xbf16>,
    %c0_2 = arith.constant 0 : index
    %c17 = arith.constant 17 : index
    %c0_3 = arith.constant 0 : index
    %2 = vector.load %arg6[%c0_2, %c17, %c0_3] : memref<2x18x128xbf16, #tpu.memory_space<vmem>>, vector<2x1x128xbf16>
    tpu.vector_store %arg6[%c0_2, %c17, %c0_3], %0 {strides = array<i32>} : memref<2x18x128xbf16, #tpu.memory_space<vmem>>, vector<2x1x128xbf16>,
    %c0_4 = arith.constant 0 : index
    %c0_5 = arith.constant 0 : index
    %3 = vector.load %arg4[%c0_4, %c0_5] : memref<4x128xf32, #tpu.memory_space<vmem>>, vector<1x128xf32>
    %c1 = arith.constant 1 : index
    %c0_6 = arith.constant 0 : index
    %4 = vector.load %arg4[%c1, %c0_6] : memref<4x128xf32, #tpu.memory_space<vmem>>, vector<1x128xf32>
    %c2 = arith.constant 2 : index
    %c0_7 = arith.constant 0 : index
    %5 = vector.load %arg4[%c2, %c0_7] : memref<4x128xf32, #tpu.memory_space<vmem>>, vector<1x128xf32>
    %c3 = arith.constant 3 : index
    %c0_8 = arith.constant 0 : index
    %6 = vector.load %arg4[%c3, %c0_8] : memref<4x128xf32, #tpu.memory_space<vmem>>, vector<1x128xf32>
    %c0_9 = arith.constant 0 : index
    %c1_10 = arith.constant 1 : index
    %c0_11 = arith.constant 0 : index
    %7 = vector.load %arg1[%c0_9, %c1_10, %c0_11] : memref<2x18x128xf32, #tpu.memory_space<vmem>>, vector<2x16x128xf32>
    %8 = vector.shape_cast %7 : vector<2x16x128xf32> to vector<32x128xf32>
    %c0_12 = arith.constant 0 : index
    %c0_13 = arith.constant 0 : index
    %c0_14 = arith.constant 0 : index
    %9 = vector.load %arg1[%c0_12, %c0_13, %c0_14] : memref<2x18x128xf32, #tpu.memory_space<vmem>>, vector<2x16x128xf32>
    %10 = arith.truncf %9 : vector<2x16x128xf32> to vector<2x16x128xbf16>
    %11 = vector.shape_cast %10 : vector<2x16x128xbf16> to vector<32x128xbf16>
    %c0_15 = arith.constant 0 : index
    %c0_16 = arith.constant 0 : index
    %c0_17 = arith.constant 0 : index
    %12 = vector.load %arg2[%c0_15, %c0_16, %c0_17] : memref<3x128x128xbf16, #tpu.memory_space<vmem>>, vector<1x128x128xbf16>
    %13 = vector.shape_cast %12 : vector<1x128x128xbf16> to vector<128x128xbf16>
    %cst_18 = arith.constant dense<0.000000e+00> : vector<32x128xf32>
    %14 = tpu.matmul %11, %13, %cst_18 {dimension_numbers = #tpu.dot_dimension_numbers<[1], [0], [0], [1], [0, 0, 1, 1], [], []>} : vector<32x128xbf16>, vector<128x128xbf16>, vector<32x128xf32> -> vector<32x128xf32>
    %15 = arith.truncf %8 : vector<32x128xf32> to vector<32x128xbf16>
    %c1_19 = arith.constant 1 : index
    %c0_20 = arith.constant 0 : index
    %c0_21 = arith.constant 0 : index
    %16 = vector.load %arg2[%c1_19, %c0_20, %c0_21] : memref<3x128x128xbf16, #tpu.memory_space<vmem>>, vector<1x128x128xbf16>
    %17 = vector.shape_cast %16 : vector<1x128x128xbf16> to vector<128x128xbf16>
    %cst_22 = arith.constant dense<0.000000e+00> : vector<32x128xf32>
    %18 = tpu.matmul %15, %17, %cst_22 {dimension_numbers = #tpu.dot_dimension_numbers<[1], [0], [0], [1], [0, 0, 1, 1], [], []>} : vector<32x128xbf16>, vector<128x128xbf16>, vector<32x128xf32> -> vector<32x128xf32>
    %19 = arith.addf %14, %18 : vector<32x128xf32>
    %c0_23 = arith.constant 0 : index
    %c2_24 = arith.constant 2 : index
    %c0_25 = arith.constant 0 : index
    %20 = vector.load %arg1[%c0_23, %c2_24, %c0_25] : memref<2x18x128xf32, #tpu.memory_space<vmem>>, vector<2x16x128xf32>
    %21 = arith.truncf %20 : vector<2x16x128xf32> to vector<2x16x128xbf16>
    %22 = vector.shape_cast %21 : vector<2x16x128xbf16> to vector<32x128xbf16>
    %c2_26 = arith.constant 2 : index
    %c0_27 = arith.constant 0 : index
    %c0_28 = arith.constant 0 : index
    %23 = vector.load %arg2[%c2_26, %c0_27, %c0_28] : memref<3x128x128xbf16, #tpu.memory_space<vmem>>, vector<1x128x128xbf16>
    %24 = vector.shape_cast %23 : vector<1x128x128xbf16> to vector<128x128xbf16>
    %cst_29 = arith.constant dense<0.000000e+00> : vector<32x128xf32>
    %25 = tpu.matmul %22, %24, %cst_29 {dimension_numbers = #tpu.dot_dimension_numbers<[1], [0], [0], [1], [0, 0, 1, 1], [], []>} : vector<32x128xbf16>, vector<128x128xbf16>, vector<32x128xf32> -> vector<32x128xf32>
    %26 = arith.addf %19, %25 : vector<32x128xf32>
    %27 = vector.broadcast %3 : vector<1x128xf32> to vector<32x128xf32>
    %28 = arith.mulf %26, %27 : vector<32x128xf32>
    %29 = vector.broadcast %4 : vector<1x128xf32> to vector<32x128xf32>
    %30 = arith.addf %28, %29 : vector<32x128xf32>
    %cst_30 = arith.constant 0.000000e+00 : f32
    %31 = vector.broadcast %cst_30 : f32 to vector<32x128xf32>
    %32 = arith.maximumf %30, %31 : vector<32x128xf32>
    %33 = arith.truncf %32 : vector<32x128xf32> to vector<32x128xbf16>
    %c1_31 = arith.constant 1 : index
    %c0_32 = arith.constant 0 : index
    %c0_33 = arith.constant 0 : index
    %34 = vector.load %arg3[%c1_31, %c0_32, %c0_33] : memref<3x128x128xbf16, #tpu.memory_space<vmem>>, vector<1x128x128xbf16>
    %35 = vector.shape_cast %34 : vector<1x128x128xbf16> to vector<128x128xbf16>
    %cst_34 = arith.constant dense<0.000000e+00> : vector<32x128xf32>
    %36 = tpu.matmul %33, %35, %cst_34 {dimension_numbers = #tpu.dot_dimension_numbers<[1], [0], [0], [1], [0, 0, 1, 1], [], []>} : vector<32x128xbf16>, vector<128x128xbf16>, vector<32x128xf32> -> vector<32x128xf32>
    %37 = vector.shape_cast %33 : vector<32x128xbf16> to vector<2x16x128xbf16>
    %c0_35 = arith.constant 0 : index
    %c1_36 = arith.constant 1 : index
    %c0_37 = arith.constant 0 : index
    %38 = vector.load %arg6[%c0_35, %c1_36, %c0_37] : memref<2x18x128xbf16, #tpu.memory_space<vmem>>, vector<2x16x128xbf16>
    tpu.vector_store %arg6[%c0_35, %c1_36, %c0_37], %37 {strides = array<i32>} : memref<2x18x128xbf16, #tpu.memory_space<vmem>>, vector<2x16x128xbf16>,
    %c0_38 = arith.constant 0 : index
    %c0_39 = arith.constant 0 : index
    %c0_40 = arith.constant 0 : index
    %39 = vector.load %arg6[%c0_38, %c0_39, %c0_40] : memref<2x18x128xbf16, #tpu.memory_space<vmem>>, vector<2x16x128xbf16>
    %40 = vector.shape_cast %39 : vector<2x16x128xbf16> to vector<32x128xbf16>
    %c0_41 = arith.constant 0 : index
    %c0_42 = arith.constant 0 : index
    %c0_43 = arith.constant 0 : index
    %41 = vector.load %arg3[%c0_41, %c0_42, %c0_43] : memref<3x128x128xbf16, #tpu.memory_space<vmem>>, vector<1x128x128xbf16>
    %42 = vector.shape_cast %41 : vector<1x128x128xbf16> to vector<128x128xbf16>
    %cst_44 = arith.constant dense<0.000000e+00> : vector<32x128xf32>
    %43 = tpu.matmul %40, %42, %cst_44 {dimension_numbers = #tpu.dot_dimension_numbers<[1], [0], [0], [1], [0, 0, 1, 1], [], []>} : vector<32x128xbf16>, vector<128x128xbf16>, vector<32x128xf32> -> vector<32x128xf32>
    %44 = arith.addf %36, %43 : vector<32x128xf32>
    %c0_45 = arith.constant 0 : index
    %c2_46 = arith.constant 2 : index
    %c0_47 = arith.constant 0 : index
    %45 = vector.load %arg6[%c0_45, %c2_46, %c0_47] : memref<2x18x128xbf16, #tpu.memory_space<vmem>>, vector<2x16x128xbf16>
    %46 = vector.shape_cast %45 : vector<2x16x128xbf16> to vector<32x128xbf16>
    %c2_48 = arith.constant 2 : index
    %c0_49 = arith.constant 0 : index
    %c0_50 = arith.constant 0 : index
    %47 = vector.load %arg3[%c2_48, %c0_49, %c0_50] : memref<3x128x128xbf16, #tpu.memory_space<vmem>>, vector<1x128x128xbf16>
    %48 = vector.shape_cast %47 : vector<1x128x128xbf16> to vector<128x128xbf16>
    %cst_51 = arith.constant dense<0.000000e+00> : vector<32x128xf32>
    %49 = tpu.matmul %46, %48, %cst_51 {dimension_numbers = #tpu.dot_dimension_numbers<[1], [0], [0], [1], [0, 0, 1, 1], [], []>} : vector<32x128xbf16>, vector<128x128xbf16>, vector<32x128xf32> -> vector<32x128xf32>
    %50 = arith.addf %44, %49 : vector<32x128xf32>
    %51 = vector.broadcast %5 : vector<1x128xf32> to vector<32x128xf32>
    %52 = arith.mulf %50, %51 : vector<32x128xf32>
    %53 = vector.broadcast %6 : vector<1x128xf32> to vector<32x128xf32>
    %54 = arith.addf %52, %53 : vector<32x128xf32>
    %55 = arith.addf %54, %8 : vector<32x128xf32>
    %cst_52 = arith.constant 0.000000e+00 : f32
    %56 = vector.broadcast %cst_52 : f32 to vector<32x128xf32>
    %57 = arith.maximumf %55, %56 : vector<32x128xf32>
    %58 = vector.shape_cast %57 : vector<32x128xf32> to vector<2x16x128xf32>
    %c0_53 = arith.constant 0 : index
    %c0_54 = arith.constant 0 : index
    %c0_55 = arith.constant 0 : index
    %59 = vector.load %arg5[%c0_53, %c0_54, %c0_55] : memref<2x16x128xf32, #tpu.memory_space<vmem>>, vector<2x16x128xf32>
    tpu.vector_store %arg5[%c0_53, %c0_54, %c0_55], %58 {strides = array<i32>} : memref<2x16x128xf32, #tpu.memory_space<vmem>>, vector<2x16x128xf32>,
    return
  }
  func.func @transform_0(%arg0: i32) -> (i32, i32, i32) {
    %c0_i32 = arith.constant 0 : i32
    %c0_i32_0 = arith.constant 0 : i32
    %c0_i32_1 = arith.constant 0 : i32
    return %arg0, %c0_i32, %c0_i32_0 : i32, i32, i32
  }
  func.func @transform_1(%arg0: i32) -> (i32, i32, i32) {
    %c0_i32 = arith.constant 0 : i32
    %c0_i32_0 = arith.constant 0 : i32
    %c0_i32_1 = arith.constant 0 : i32
    %c0_i32_2 = arith.constant 0 : i32
    return %c0_i32, %c0_i32_0, %c0_i32_1 : i32, i32, i32
  }
  func.func @transform_2(%arg0: i32) -> (i32, i32, i32) {
    %c0_i32 = arith.constant 0 : i32
    %c0_i32_0 = arith.constant 0 : i32
    %c0_i32_1 = arith.constant 0 : i32
    %c0_i32_2 = arith.constant 0 : i32
    return %c0_i32, %c0_i32_0, %c0_i32_1 : i32, i32, i32
  }
  func.func @transform_3(%arg0: i32) -> (i32, i32) {
    %c0_i32 = arith.constant 0 : i32
    %c0_i32_0 = arith.constant 0 : i32
    %c0_i32_1 = arith.constant 0 : i32
    return %c0_i32, %c0_i32_0 : i32, i32
  }
  func.func @transform_4(%arg0: i32) -> (i32, i32, i32) {
    %c0_i32 = arith.constant 0 : i32
    %c0_i32_0 = arith.constant 0 : i32
    %c0_i32_1 = arith.constant 0 : i32
    return %arg0, %c0_i32, %c0_i32_0 : i32, i32, i32
  }
}

</mosaic_0001>

<llo_original>
// kernel: residual_block_nchw.1
$region0: #{residual_block_nchw.1}
  #allocation0 [shape = 'u32[]', space=smem, size = 0x4, offset = 0x4, fixed_abs, tag = 'smem constant byte address 0x4 - core index']
  #allocation1 [shape = 'u32[144,128]{1,0:T(1,128)}', space=vmem, size = 0x12000, scoped, tag = 'internal scratch']
  #allocation2 [shape = 'bf16[2,18,128]{2,1,0:T(8,128)(2,1)}', space=vmem, size = 0x3000, scoped, tag = 'scratch operand']
  %s0 = inlined_call_operand.vmem [shape: f32[2,18,128], index: 0, kind: input, shape index: {}]
  %s1 = inlined_call_operand.vmem [shape: bf16[3,128,128], index: 1, kind: input, shape index: {}]
  %s2 = inlined_call_operand.vmem [shape: bf16[3,128,128], index: 2, kind: input, shape index: {}]
  %s3 = inlined_call_operand.vmem [shape: f32[4,128], index: 3, kind: input, shape index: {}]
  %s4 = inlined_call_operand.vmem [shape: f32[2,16,128], index: 4, kind: output, shape index: {}]
  %s5 = sld [smem:[#allocation0]]
  $region26: #{residual_block_nchw.1} parent=0
    _
  %s7 = ssub.s32 1, %s5
  %s8 = scalar_select 0, %s7, %s5
  // Predicated region
  $region2: #{residual_block_nchw.1} parent=0 // pred_check
    _
  $region3: #{residual_block_nchw.1} parent=0 // pred_check_branch
    %10 = sbr.rel (0) target = $region5
  $region4: #{residual_block_nchw.1} parent=0 // pred_region
    _
  $region5: #{residual_block_nchw.1} parent=0 // pred_fallthru
    _
  // Predicated region
  $region6: #{residual_block_nchw.1} parent=0 // pred_check
    _
  $region7: #{residual_block_nchw.1} parent=0 // pred_check_branch
    %12 = sbr.rel (0) target = $region9
  $region8: #{residual_block_nchw.1} parent=0 // pred_region
    _
  $region9: #{residual_block_nchw.1} parent=0 // pred_fallthru
    _
  // Predicated region
  $region10: #{residual_block_nchw.1} parent=0 // pred_check
    _
  $region11: #{residual_block_nchw.1} parent=0 // pred_check_branch
    %14 = sbr.rel (0) target = $region13
  $region12: #{residual_block_nchw.1} parent=0 // pred_region
    _
  $region13: #{residual_block_nchw.1} parent=0 // pred_fallthru
    _
  // Predicated region
  $region14: #{residual_block_nchw.1} parent=0 // pred_check
    _
  $region15: #{residual_block_nchw.1} parent=0 // pred_check_branch
    %16 = sbr.rel (0) target = $region17
  $region16: #{residual_block_nchw.1} parent=0 // pred_region
    _
  $region17: #{residual_block_nchw.1} parent=0 // pred_fallthru
    _
  %vm18 = vcmask 1040384
  %vm19 = vsmask.f32 256
  %vm20 = vmand %vm18, %vm19
  %v21 = vld [vmem:[#allocation2] sm:$0x1]
  %v22 = vsel %vm20, 0, %v21
  %23 = vst [vmem:[#allocation2] sm:$0x1] %v22
  %v24 = vld [vmem:[#allocation2 + $0xc] sm:$0x1]
  %v25 = vsel %vm20, 0, %v24
  %26 = vst [vmem:[#allocation2 + $0xc] sm:$0x1] %v25
  %vm27 = vsmask.f32 7938
  %vm28 = vmand %vm18, %vm27
  %v29 = vld [vmem:[#allocation2 + $0x8] sm:$0x1]
  %v30 = vsel %vm28, 0, %v29
  %31 = vst [vmem:[#allocation2 + $0x8] sm:$0x1] %v30
  %v32 = vld [vmem:[#allocation2 + $0x14] sm:$0x1]
  %v33 = vsel %vm28, 0, %v32
  %34 = vst [vmem:[#allocation2 + $0x14] sm:$0x1] %v33
  %v35 = vld [vmem:[%s3] sm:$0x1]
  %v36 = vld [vmem:[%s3 + $0x1] sm:$0x1]
  %v37 = vld [vmem:[%s3 + $0x2] sm:$0x1]
  %v38 = vld [vmem:[%s3 + $0x3] sm:$0x1]
  %v39 = vld [vmem:[%s0 + $0x1] sm:$0xff]
  %v40 = vld [vmem:[%s0 + $0x9] sm:$0xff]
  %v41 = vld [vmem:[%s0 + $0x19] sm:$0xff]
  %v42 = vld [vmem:[%s0 + $0x21] sm:$0xff]
  %v43 = vld [vmem:[%s0] sm:$0xff]
  %v44 = vld [vmem:[%s0 + $0x8] sm:$0xff]
  %v45 = vld [vmem:[%s0 + $0x18] sm:$0xff]
  %v46 = vld [vmem:[%s0 + $0x20] sm:$0xff]
  %v47 = vpack.c.bf16 %v44, %v43
  %v48 = vpack.c.bf16 %v46, %v45
  %v49 = vld [vmem:[%s1] sm:$0xf]
  %v50 = vld [vmem:[%s1 + $0x4] sm:$0xf]
  %v51 = vld [vmem:[%s1 + $0x8] sm:$0xf]
  %v52 = vld [vmem:[%s1 + $0xc] sm:$0xf]
  %v53 = vld [vmem:[%s1 + $0x10] sm:$0xf]
  %v54 = vld [vmem:[%s1 + $0x14] sm:$0xf]
  %v55 = vld [vmem:[%s1 + $0x18] sm:$0xf]
  %v56 = vld [vmem:[%s1 + $0x1c] sm:$0xf]
  %v57 = vld [vmem:[%s1 + $0x20] sm:$0xf]
  %v58 = vld [vmem:[%s1 + $0x24] sm:$0xf]
  %v59 = vld [vmem:[%s1 + $0x28] sm:$0xf]
  %v60 = vld [vmem:[%s1 + $0x2c] sm:$0xf]
  %v61 = vld [vmem:[%s1 + $0x30] sm:$0xf]
  %v62 = vld [vmem:[%s1 + $0x34] sm:$0xf]
  %v63 = vld [vmem:[%s1 + $0x38] sm:$0xf]
  %v64 = vld [vmem:[%s1 + $0x3c] sm:$0xf]
  %v65 = vpack.c.bf16 %v40, %v39
  %v66 = vpack.c.bf16 %v42, %v41
  %s67 = scalar_lea.vmem %s1, 64
  %v68 = vld [vmem:[%s67] sm:$0xf]
  %v69 = vld [vmem:[%s67 + $0x4] sm:$0xf]
  %v70 = vld [vmem:[%s67 + $0x8] sm:$0xf]
  %v71 = vld [vmem:[%s67 + $0xc] sm:$0xf]
  %v72 = vld [vmem:[%s67 + $0x10] sm:$0xf]
  %v73 = vld [vmem:[%s67 + $0x14] sm:$0xf]
  %v74 = vld [vmem:[%s67 + $0x18] sm:$0xf]
  %v75 = vld [vmem:[%s67 + $0x1c] sm:$0xf]
  %v76 = vld [vmem:[%s67 + $0x20] sm:$0xf]
  %v77 = vld [vmem:[%s67 + $0x24] sm:$0xf]
  %v78 = vld [vmem:[%s67 + $0x28] sm:$0xf]
  %v79 = vld [vmem:[%s67 + $0x2c] sm:$0xf]
  %v80 = vld [vmem:[%s67 + $0x30] sm:$0xf]
  %v81 = vld [vmem:[%s67 + $0x34] sm:$0xf]
  %v82 = vld [vmem:[%s67 + $0x38] sm:$0xf]
  %v83 = vld [vmem:[%s67 + $0x3c] sm:$0xf]
  %v100 = vunpack.c.l.b16 %v68
  %v101 = vunpack.c.l.b16 %v69
  %v102 = vunpack.c.l.b16 %v70
  %v103 = vunpack.c.l.b16 %v71
  %v104 = vunpack.c.l.b16 %v72
  %v105 = vunpack.c.l.b16 %v73
  %v106 = vunpack.c.l.b16 %v74
  %v107 = vunpack.c.l.b16 %v75
  %v108 = vunpack.c.l.b16 %v76
  %v109 = vunpack.c.l.b16 %v77
  %v110 = vunpack.c.l.b16 %v78
  %v111 = vunpack.c.l.b16 %v79
  %v112 = vunpack.c.l.b16 %v80
  %v113 = vunpack.c.l.b16 %v81
  %v114 = vunpack.c.l.b16 %v82
  %v115 = vunpack.c.l.b16 %v83
  %v116 = vpack.c.b16 %v101, %v100
  %v117 = vpack.c.b16 %v103, %v102
  %v118 = vpack.c.b16 %v105, %v104
  %v119 = vpack.c.b16 %v107, %v106
  %v120 = vpack.c.b16 %v109, %v108
  %v121 = vpack.c.b16 %v111, %v110
  %v122 = vpack.c.b16 %v113, %v112
  %v123 = vpack.c.b16 %v115, %v114
  %132 = vmatprep.subr.bf16.mxu0 0
  %133 = vmatpush1.bf16.msra.mxu0 %v123
  %134 = vmatprep.subr.bf16.mxu0 0
  %135 = vmatpush1.bf16.msra.mxu0 %v122
  %136 = vmatprep.subr.bf16.mxu0 0
  %137 = vmatpush1.bf16.msra.mxu0 %v121
  %138 = vmatprep.subr.bf16.mxu0 0
  %139 = vmatpush1.bf16.msra.mxu0 %v120
  %140 = vmatprep.subr.bf16.mxu0 0
  %141 = vmatpush1.bf16.msra.mxu0 %v119
  %142 = vmatprep.subr.bf16.mxu0 0
  %143 = vmatpush1.bf16.msra.mxu0 %v118
  %144 = vmatprep.subr.bf16.mxu0 0
  %145 = vmatpush1.bf16.msra.mxu0 %v117
  %146 = vmatprep.subr.bf16.mxu0 0
  %147 = vmatpush1.bf16.msra.mxu0 %v116
  %148 = vmatprep.subr.bf16.mxu0 0
  %149 = vmatpush2.bf16.msra.mxu0 0
  %150 = vmatprep.subr.bf16.mxu0 0
  %151 = vmatpush2.bf16.msra.mxu0 0
  %152 = vmatprep.subr.bf16.mxu0 0
  %153 = vmatpush2.bf16.msra.mxu0 0
  %154 = vmatprep.subr.bf16.mxu0 0
  %155 = vmatpush2.bf16.msra.mxu0 0
  %156 = vmatprep.subr.bf16.mxu0 0
  %157 = vmatpush2.bf16.msra.mxu0 0
  %158 = vmatprep.subr.bf16.mxu0 0
  %159 = vmatpush2.bf16.msra.mxu0 0
  %160 = vmatprep.subr.bf16.mxu0 0
  %161 = vmatpush2.bf16.msra.mxu0 0
  %162 = vmatprep.subr.bf16.mxu0 0
  %163 = vmatpush2.bf16.msra.mxu0 0
  %164 = vmatprep.mubr.bf16.mxu0 0
  %165 = vmatmul.mubr.bf16.gmra.mxu0 %v65
  %v166 = vpop.f32.mrf.mxu0
  %v167 = vadd.f32 0.0, %v166
  %v168 = vpop.f32.mrf.mxu0
  %v169 = vpop.f32.mrf.mxu0
  %v170 = vadd.f32 0.0, %v169
  %v171 = vpop.f32.mrf.mxu0
  %172 = vmatprep.mubr.bf16.mxu0 0
  %173 = vmatmul.mubr.bf16.gmra.mxu0 %v66
  %v174 = vpop.f32.mrf.mxu0
  %v175 = vadd.f32 0.0, %v174
  %v176 = vpop.f32.mrf.mxu0
  %v177 = vpop.f32.mrf.mxu0
  %v178 = vadd.f32 0.0, %v177
  %v179 = vpop.f32.mrf.mxu0
  %180 = vdwg.mxu0
  %v197 = vunpack.c.l.b16 %v49
  %v198 = vunpack.c.l.b16 %v50
  %v199 = vunpack.c.l.b16 %v51
  %v200 = vunpack.c.l.b16 %v52
  %v201 = vunpack.c.l.b16 %v53
  %v202 = vunpack.c.l.b16 %v54
  %v203 = vunpack.c.l.b16 %v55
  %v204 = vunpack.c.l.b16 %v56
  %v205 = vunpack.c.l.b16 %v57
  %v206 = vunpack.c.l.b16 %v58
  %v207 = vunpack.c.l.b16 %v59
  %v208 = vunpack.c.l.b16 %v60
  %v209 = vunpack.c.l.b16 %v61
  %v210 = vunpack.c.l.b16 %v62
  %v211 = vunpack.c.l.b16 %v63
  %v212 = vunpack.c.l.b16 %v64
  %v213 = vpack.c.b16 %v198, %v197
  %v214 = vpack.c.b16 %v200, %v199
  %v215 = vpack.c.b16 %v202, %v201
  %v216 = vpack.c.b16 %v204, %v203
  %v217 = vpack.c.b16 %v206, %v205
  %v218 = vpack.c.b16 %v208, %v207
  %v219 = vpack.c.b16 %v210, %v209
  %v220 = vpack.c.b16 %v212, %v211
  %229 = vmatprep.subr.bf16.mxu0 0
  %230 = vmatpush1.bf16.msra.mxu0 %v220
  %231 = vmatprep.subr.bf16.mxu0 0
  %232 = vmatpush1.bf16.msra.mxu0 %v219
  %233 = vmatprep.subr.bf16.mxu0 0
  %234 = vmatpush1.bf16.msra.mxu0 %v218
  %235 = vmatprep.subr.bf16.mxu0 0
  %236 = vmatpush1.bf16.msra.mxu0 %v217
  %237 = vmatprep.subr.bf16.mxu0 0
  %238 = vmatpush1.bf16.msra.mxu0 %v216
  %239 = vmatprep.subr.bf16.mxu0 0
  %240 = vmatpush1.bf16.msra.mxu0 %v215
  %241 = vmatprep.subr.bf16.mxu0 0
  %242 = vmatpush1.bf16.msra.mxu0 %v214
  %243 = vmatprep.subr.bf16.mxu0 0
  %244 = vmatpush1.bf16.msra.mxu0 %v213
  %245 = vmatprep.subr.bf16.mxu0 0
  %246 = vmatpush2.bf16.msra.mxu0 0
  %247 = vmatprep.subr.bf16.mxu0 0
  %248 = vmatpush2.bf16.msra.mxu0 0
  %249 = vmatprep.subr.bf16.mxu0 0
  %250 = vmatpush2.bf16.msra.mxu0 0
  %251 = vmatprep.subr.bf16.mxu0 0
  %252 = vmatpush2.bf16.msra.mxu0 0
  %253 = vmatprep.subr.bf16.mxu0 0
  %254 = vmatpush2.bf16.msra.mxu0 0
  %255 = vmatprep.subr.bf16.mxu0 0
  %256 = vmatpush2.bf16.msra.mxu0 0
  %257 = vmatprep.subr.bf16.mxu0 0
  %258 = vmatpush2.bf16.msra.mxu0 0
  %259 = vmatprep.subr.bf16.mxu0 0
  %260 = vmatpush2.bf16.msra.mxu0 0
  %261 = vmatprep.mubr.bf16.mxu0 0
  %262 = vmatmul.mubr.bf16.gmra.mxu0 %v47
  %v263 = vpop.f32.mrf.mxu0
  %v264 = vadd.f32 %v167, %v263
  %v265 = vpop.f32.mrf.mxu0
  %v266 = vpop.f32.mrf.mxu0
  %v267 = vadd.f32 %v170, %v266
  %v268 = vpop.f32.mrf.mxu0
  %269 = vmatprep.mubr.bf16.mxu0 0
  %270 = vmatmul.mubr.bf16.gmra.mxu0 %v48
  %v271 = vpop.f32.mrf.mxu0
  %v272 = vadd.f32 %v175, %v271
  %v273 = vpop.f32.mrf.mxu0
  %v274 = vpop.f32.mrf.mxu0
  %v275 = vadd.f32 %v178, %v274
  %v276 = vpop.f32.mrf.mxu0
  %277 = vdwg.mxu0
  %v278 = vld [vmem:[%s0 + $0x2] sm:$0xff]
  %v279 = vld [vmem:[%s0 + $0xa] sm:$0xff]
  %v280 = vld [vmem:[%s0 + $0x1a] sm:$0xff]
  %v281 = vld [vmem:[%s0 + $0x22] sm:$0xff]
  %v282 = vpack.c.bf16 %v279, %v278
  %v283 = vpack.c.bf16 %v281, %v280
  %s284 = scalar_lea.vmem %s1, 128
  %v285 = vld [vmem:[%s284] sm:$0xf]
  %v286 = vld [vmem:[%s284 + $0x4] sm:$0xf]
  %v287 = vld [vmem:[%s284 + $0x8] sm:$0xf]
  %v288 = vld [vmem:[%s284 + $0xc] sm:$0xf]
  %v289 = vld [vmem:[%s284 + $0x10] sm:$0xf]
  %v290 = vld [vmem:[%s284 + $0x14] sm:$0xf]
  %v291 = vld [vmem:[%s284 + $0x18] sm:$0xf]
  %v292 = vld [vmem:[%s284 + $0x1c] sm:$0xf]
  %v293 = vld [vmem:[%s284 + $0x20] sm:$0xf]
  %v294 = vld [vmem:[%s284 + $0x24] sm:$0xf]
  %v295 = vld [vmem:[%s284 + $0x28] sm:$0xf]
  %v296 = vld [vmem:[%s284 + $0x2c] sm:$0xf]
  %v297 = vld [vmem:[%s284 + $0x30] sm:$0xf]
  %v298 = vld [vmem:[%s284 + $0x34] sm:$0xf]
  %v299 = vld [vmem:[%s284 + $0x38] sm:$0xf]
  %v300 = vld [vmem:[%s284 + $0x3c] sm:$0xf]
  %v317 = vunpack.c.l.b16 %v285
  %v318 = vunpack.c.l.b16 %v286
  %v319 = vunpack.c.l.b16 %v287
  %v320 = vunpack.c.l.b16 %v288
  %v321 = vunpack.c.l.b16 %v289
  %v322 = vunpack.c.l.b16 %v290
  %v323 = vunpack.c.l.b16 %v291
  %v324 = vunpack.c.l.b16 %v292
  %v325 = vunpack.c.l.b16 %v293
  %v326 = vunpack.c.l.b16 %v294
  %v327 = vunpack.c.l.b16 %v295
  %v328 = vunpack.c.l.b16 %v296
  %v329 = vunpack.c.l.b16 %v297
  %v330 = vunpack.c.l.b16 %v298
  %v331 = vunpack.c.l.b16 %v299
  %v332 = vunpack.c.l.b16 %v300
  %v333 = vpack.c.b16 %v318, %v317
  %v334 = vpack.c.b16 %v320, %v319
  %v335 = vpack.c.b16 %v322, %v321
  %v336 = vpack.c.b16 %v324, %v323
  %v337 = vpack.c.b16 %v326, %v325
  %v338 = vpack.c.b16 %v328, %v327
  %v339 = vpack.c.b16 %v330, %v329
  %v340 = vpack.c.b16 %v332, %v331
  %349 = vmatprep.subr.bf16.mxu0 0
  %350 = vmatpush1.bf16.msra.mxu0 %v340
  %351 = vmatprep.subr.bf16.mxu0 0
  %352 = vmatpush1.bf16.msra.mxu0 %v339
  %353 = vmatprep.subr.bf16.mxu0 0
  %354 = vmatpush1.bf16.msra.mxu0 %v338
  %355 = vmatprep.subr.bf16.mxu0 0
  %356 = vmatpush1.bf16.msra.mxu0 %v337
  %357 = vmatprep.subr.bf16.mxu0 0
  %358 = vmatpush1.bf16.msra.mxu0 %v336
  %359 = vmatprep.subr.bf16.mxu0 0
  %360 = vmatpush1.bf16.msra.mxu0 %v335
  %361 = vmatprep.subr.bf16.mxu0 0
  %362 = vmatpush1.bf16.msra.mxu0 %v334
  %363 = vmatprep.subr.bf16.mxu0 0
  %364 = vmatpush1.bf16.msra.mxu0 %v333
  %365 = vmatprep.subr.bf16.mxu0 0
  %366 = vmatpush2.bf16.msra.mxu0 0
  %367 = vmatprep.subr.bf16.mxu0 0
  %368 = vmatpush2.bf16.msra.mxu0 0
  %369 = vmatprep.subr.bf16.mxu0 0
  %370 = vmatpush2.bf16.msra.mxu0 0
  %371 = vmatprep.subr.bf16.mxu0 0
  %372 = vmatpush2.bf16.msra.mxu0 0
  %373 = vmatprep.subr.bf16.mxu0 0
  %374 = vmatpush2.bf16.msra.mxu0 0
  %375 = vmatprep.subr.bf16.mxu0 0
  %376 = vmatpush2.bf16.msra.mxu0 0
  %377 = vmatprep.subr.bf16.mxu0 0
  %378 = vmatpush2.bf16.msra.mxu0 0
  %379 = vmatprep.subr.bf16.mxu0 0
  %380 = vmatpush2.bf16.msra.mxu0 0
  %381 = vmatprep.mubr.bf16.mxu0 0
  %382 = vmatmul.mubr.bf16.gmra.mxu0 %v282
  %v383 = vpop.f32.mrf.mxu0
  %v384 = vadd.f32 0.0, %v383
  %v385 = vpop.f32.mrf.mxu0
  %v386 = vpop.f32.mrf.mxu0
  %v387 = vadd.f32 0.0, %v386
  %v388 = vpop.f32.mrf.mxu0
  %389 = vmatprep.mubr.bf16.mxu0 0
  %390 = vmatmul.mubr.bf16.gmra.mxu0 %v283
  %v391 = vpop.f32.mrf.mxu0
  %v392 = vadd.f32 0.0, %v391
  %v393 = vpop.f32.mrf.mxu0
  %v394 = vpop.f32.mrf.mxu0
  %v395 = vadd.f32 0.0, %v394
  %v396 = vpop.f32.mrf.mxu0
  %397 = vdwg.mxu0
  %v398 = vadd.f32 %v264, %v384
  %v399 = vadd.f32 %v267, %v387
  %v400 = vadd.f32 %v272, %v392
  %v401 = vadd.f32 %v275, %v395
  %v402 = vlaneseq
  %v403 = vshrl.u32 %v402, 7
  %v404 = vsub.s32 0, %v403
  %v405 = vrot.slane %v35, %v404
  %v406 = vmul.f32 %v398, %v405
  %v407 = vmul.f32 %v399, %v405
  %v408 = vmul.f32 %v400, %v405
  %v409 = vmul.f32 %v401, %v405
  %v410 = vlaneseq
  %v411 = vshrl.u32 %v410, 7
  %v412 = vsub.s32 0, %v411
  %v413 = vrot.slane %v36, %v412
  %v414 = vadd.f32 %v406, %v413
  %v415 = vadd.f32 %v407, %v413
  %v416 = vadd.f32 %v408, %v413
  %v417 = vadd.f32 %v409, %v413
  %v418 = vmax.f32 %v414, 0.0
  %v419 = vmax.f32 %v415, 0.0
  %v420 = vmax.f32 %v416, 0.0
  %v421 = vmax.f32 %v417, 0.0
  %v422 = vpack.c.bf16 %v419, %v418
  %v423 = vpack.c.bf16 %v421, %v420
  %s424 = scalar_lea.vmem %s2, 64
  %v425 = vld [vmem:[%s424] sm:$0xf]
  %v426 = vld [vmem:[%s424 + $0x4] sm:$0xf]
  %v427 = vld [vmem:[%s424 + $0x8] sm:$0xf]
  %v428 = vld [vmem:[%s424 + $0xc] sm:$0xf]
  %v429 = vld [vmem:[%s424 + $0x10] sm:$0xf]
  %v430 = vld [vmem:[%s424 + $0x14] sm:$0xf]
  %v431 = vld [vmem:[%s424 + $0x18] sm:$0xf]
  %v432 = vld [vmem:[%s424 + $0x1c] sm:$0xf]
  %v433 = vld [vmem:[%s424 + $0x20] sm:$0xf]
  %v434 = vld [vmem:[%s424 + $0x24] sm:$0xf]
  %v435 = vld [vmem:[%s424 + $0x28] sm:$0xf]
  %v436 = vld [vmem:[%s424 + $0x2c] sm:$0xf]
  %v437 = vld [vmem:[%s424 + $0x30] sm:$0xf]
  %v438 = vld [vmem:[%s424 + $0x34] sm:$0xf]
  %v439 = vld [vmem:[%s424 + $0x38] sm:$0xf]
  %v440 = vld [vmem:[%s424 + $0x3c] sm:$0xf]
  %v443 = vunpack.c.l.b16 %v422
  %v444 = vunpack.c.h.b16 %v422
  %v445 = vunpack.c.l.b16 %v423
  %v446 = vunpack.c.h.b16 %v423
  %v447 = vpack.c.b16 %v443, %v443
  %v448 = vpack.c.b16 %v444, %v444
  %v449 = vpack.c.b16 %v445, %v445
  %v450 = vpack.c.b16 %v446, %v446
  %vm451 = vsmask.f32 4368
  %vm452 = vmor %vm19, %vm451
  %v454 = vshrl.u32 %v447, 16
  %v456 = vrot.slane %v454, 7
  %v457 = vshll.u32 %v447, 16
  %v459 = vor.u32 %v456, %v457
  %v460 = vrot.slane %v456, 4
  %v462 = vshrl.u32 %v448, 16
  %v464 = vrot.slane %v462, 7
  %v465 = vshll.u32 %v448, 16
  %v467 = vor.u32 %v464, %v465
  %v468 = vsel %vm452, %v460, %v467
  %v469 = vrot.slane %v464, 4
  %v471 = vshrl.u32 %v449, 16
  %v473 = vrot.slane %v471, 7
  %v474 = vshll.u32 %v449, 16
  %v476 = vor.u32 %v473, %v474
  %v477 = vrot.slane %v473, 4
  %v479 = vshrl.u32 %v450, 16
  %v481 = vrot.slane %v479, 7
  %v482 = vshll.u32 %v450, 16
  %v484 = vor.u32 %v481, %v482
  %v485 = vsel %vm452, %v477, %v484
  %v486 = vrot.slane %v481, 4
  %vm493 = vcmask 1043456
  %vm494 = vmand %vm493, %vm27
  %v495 = vld [vmem:[#allocation2] sm:$0xf]
  %v496 = vsel %vm494, %v459, %v495
  %497 = vst [vmem:[#allocation2] sm:$0xf] %v496
  %498 = vst [vmem:[#allocation2 + $0x4] sm:$0xf] %v468
  %v499 = vld [vmem:[#allocation2 + $0x8] sm:$0x1]
  %v500 = vsel %vm20, %v469, %v499
  %501 = vst [vmem:[#allocation2 + $0x8] sm:$0x1] %v500
  %v502 = vld [vmem:[#allocation2 + $0xc] sm:$0xf]
  %v503 = vsel %vm494, %v476, %v502
  %504 = vst [vmem:[#allocation2 + $0xc] sm:$0xf] %v503
  %505 = vst [vmem:[#allocation2 + $0x10] sm:$0xf] %v485
  %v506 = vld [vmem:[#allocation2 + $0x14] sm:$0x1]
  %v507 = vsel %vm20, %v486, %v506
  %508 = vst [vmem:[#allocation2 + $0x14] sm:$0x1] %v507
  %v509 = vld [vmem:[#allocation2] sm:$0xf]
  %v510 = vld [vmem:[#allocation2 + $0x4] sm:$0xf]
  %v511 = vld [vmem:[#allocation2 + $0xc] sm:$0xf]
  %v512 = vld [vmem:[#allocation2 + $0x10] sm:$0xf]
  %v513 = vld [vmem:[%s2] sm:$0xf]
  %v514 = vld [vmem:[%s2 + $0x4] sm:$0xf]
  %v515 = vld [vmem:[%s2 + $0x8] sm:$0xf]
  %v516 = vld [vmem:[%s2 + $0xc] sm:$0xf]
  %v517 = vld [vmem:[%s2 + $0x10] sm:$0xf]
  %v518 = vld [vmem:[%s2 + $0x14] sm:$0xf]
  %v519 = vld [vmem:[%s2 + $0x18] sm:$0xf]
  %v520 = vld [vmem:[%s2 + $0x1c] sm:$0xf]
  %v521 = vld [vmem:[%s2 + $0x20] sm:$0xf]
  %v522 = vld [vmem:[%s2 + $0x24] sm:$0xf]
  %v523 = vld [vmem:[%s2 + $0x28] sm:$0xf]
  %v524 = vld [vmem:[%s2 + $0x2c] sm:$0xf]
  %v525 = vld [vmem:[%s2 + $0x30] sm:$0xf]
  %v526 = vld [vmem:[%s2 + $0x34] sm:$0xf]
  %v527 = vld [vmem:[%s2 + $0x38] sm:$0xf]
  %v528 = vld [vmem:[%s2 + $0x3c] sm:$0xf]
  %v533 = vunpack.c.l.b16 %v509
  %v534 = vunpack.c.l.b16 %v510
  %v535 = vunpack.c.l.b16 %v511
  %v536 = vunpack.c.l.b16 %v512
  %v537 = vpack.c.b16 %v534, %v533
  %v538 = vpack.c.b16 %v536, %v535
  %v557 = vunpack.c.l.b16 %v513
  %v558 = vunpack.c.l.b16 %v514
  %v559 = vunpack.c.l.b16 %v515
  %v560 = vunpack.c.l.b16 %v516
  %v561 = vunpack.c.l.b16 %v517
  %v562 = vunpack.c.l.b16 %v518
  %v563 = vunpack.c.l.b16 %v519
  %v564 = vunpack.c.l.b16 %v520
  %v565 = vunpack.c.l.b16 %v521
  %v566 = vunpack.c.l.b16 %v522
  %v567 = vunpack.c.l.b16 %v523
  %v568 = vunpack.c.l.b16 %v524
  %v569 = vunpack.c.l.b16 %v525
  %v570 = vunpack.c.l.b16 %v526
  %v571 = vunpack.c.l.b16 %v527
  %v572 = vunpack.c.l.b16 %v528
  %v573 = vpack.c.b16 %v558, %v557
  %v574 = vpack.c.b16 %v560, %v559
  %v575 = vpack.c.b16 %v562, %v561
  %v576 = vpack.c.b16 %v564, %v563
  %v577 = vpack.c.b16 %v566, %v565
  %v578 = vpack.c.b16 %v568, %v567
  %v579 = vpack.c.b16 %v570, %v569
  %v580 = vpack.c.b16 %v572, %v571
  %589 = vmatprep.subr.bf16.mxu0 0
  %590 = vmatpush1.bf16.msra.mxu0 %v580
  %591 = vmatprep.subr.bf16.mxu0 0
  %592 = vmatpush1.bf16.msra.mxu0 %v579
  %593 = vmatprep.subr.bf16.mxu0 0
  %594 = vmatpush1.bf16.msra.mxu0 %v578
  %595 = vmatprep.subr.bf16.mxu0 0
  %596 = vmatpush1.bf16.msra.mxu0 %v577
  %597 = vmatprep.subr.bf16.mxu0 0
  %598 = vmatpush1.bf16.msra.mxu0 %v576
  %599 = vmatprep.subr.bf16.mxu0 0
  %600 = vmatpush1.bf16.msra.mxu0 %v575
  %601 = vmatprep.subr.bf16.mxu0 0
  %602 = vmatpush1.bf16.msra.mxu0 %v574
  %603 = vmatprep.subr.bf16.mxu0 0
  %604 = vmatpush1.bf16.msra.mxu0 %v573
  %605 = vmatprep.subr.bf16.mxu0 0
  %606 = vmatpush2.bf16.msra.mxu0 0
  %607 = vmatprep.subr.bf16.mxu0 0
  %608 = vmatpush2.bf16.msra.mxu0 0
  %609 = vmatprep.subr.bf16.mxu0 0
  %610 = vmatpush2.bf16.msra.mxu0 0
  %611 = vmatprep.subr.bf16.mxu0 0
  %612 = vmatpush2.bf16.msra.mxu0 0
  %613 = vmatprep.subr.bf16.mxu0 0
  %614 = vmatpush2.bf16.msra.mxu0 0
  %615 = vmatprep.subr.bf16.mxu0 0
  %616 = vmatpush2.bf16.msra.mxu0 0
  %617 = vmatprep.subr.bf16.mxu0 0
  %618 = vmatpush2.bf16.msra.mxu0 0
  %619 = vmatprep.subr.bf16.mxu0 0
  %620 = vmatpush2.bf16.msra.mxu0 0
  %621 = vmatprep.mubr.bf16.mxu0 0
  %622 = vmatmul.mubr.bf16.gmra.mxu0 %v537
  %v623 = vpop.f32.mrf.mxu0
  %v624 = vadd.f32 0.0, %v623
  %v625 = vpop.f32.mrf.mxu0
  %v626 = vpop.f32.mrf.mxu0
  %v627 = vadd.f32 0.0, %v626
  %v628 = vpop.f32.mrf.mxu0
  %629 = vmatprep.mubr.bf16.mxu0 0
  %630 = vmatmul.mubr.bf16.gmra.mxu0 %v538
  %v631 = vpop.f32.mrf.mxu0
  %v632 = vadd.f32 0.0, %v631
  %v633 = vpop.f32.mrf.mxu0
  %v634 = vpop.f32.mrf.mxu0
  %v635 = vadd.f32 0.0, %v634
  %v636 = vpop.f32.mrf.mxu0
  %637 = vdwg.mxu0
  %v654 = vunpack.c.l.b16 %v425
  %v655 = vunpack.c.l.b16 %v426
  %v656 = vunpack.c.l.b16 %v427
  %v657 = vunpack.c.l.b16 %v428
  %v658 = vunpack.c.l.b16 %v429
  %v659 = vunpack.c.l.b16 %v430
  %v660 = vunpack.c.l.b16 %v431
  %v661 = vunpack.c.l.b16 %v432
  %v662 = vunpack.c.l.b16 %v433
  %v663 = vunpack.c.l.b16 %v434
  %v664 = vunpack.c.l.b16 %v435
  %v665 = vunpack.c.l.b16 %v436
  %v666 = vunpack.c.l.b16 %v437
  %v667 = vunpack.c.l.b16 %v438
  %v668 = vunpack.c.l.b16 %v439
  %v669 = vunpack.c.l.b16 %v440
  %v670 = vpack.c.b16 %v655, %v654
  %v671 = vpack.c.b16 %v657, %v656
  %v672 = vpack.c.b16 %v659, %v658
  %v673 = vpack.c.b16 %v661, %v660
  %v674 = vpack.c.b16 %v663, %v662
  %v675 = vpack.c.b16 %v665, %v664
  %v676 = vpack.c.b16 %v667, %v666
  %v677 = vpack.c.b16 %v669, %v668
  %686 = vmatprep.subr.bf16.mxu0 0
  %687 = vmatpush1.bf16.msra.mxu0 %v677
  %688 = vmatprep.subr.bf16.mxu0 0
  %689 = vmatpush1.bf16.msra.mxu0 %v676
  %690 = vmatprep.subr.bf16.mxu0 0
  %691 = vmatpush1.bf16.msra.mxu0 %v675
  %692 = vmatprep.subr.bf16.mxu0 0
  %693 = vmatpush1.bf16.msra.mxu0 %v674
  %694 = vmatprep.subr.bf16.mxu0 0
  %695 = vmatpush1.bf16.msra.mxu0 %v673
  %696 = vmatprep.subr.bf16.mxu0 0
  %697 = vmatpush1.bf16.msra.mxu0 %v672
  %698 = vmatprep.subr.bf16.mxu0 0
  %699 = vmatpush1.bf16.msra.mxu0 %v671
  %700 = vmatprep.subr.bf16.mxu0 0
  %701 = vmatpush1.bf16.msra.mxu0 %v670
  %702 = vmatprep.subr.bf16.mxu0 0
  %703 = vmatpush2.bf16.msra.mxu0 0
  %704 = vmatprep.subr.bf16.mxu0 0
  %705 = vmatpush2.bf16.msra.mxu0 0
  %706 = vmatprep.subr.bf16.mxu0 0
  %707 = vmatpush2.bf16.msra.mxu0 0
  %708 = vmatprep.subr.bf16.mxu0 0
  %709 = vmatpush2.bf16.msra.mxu0 0
  %710 = vmatprep.subr.bf16.mxu0 0
  %711 = vmatpush2.bf16.msra.mxu0 0
  %712 = vmatprep.subr.bf16.mxu0 0
  %713 = vmatpush2.bf16.msra.mxu0 0
  %714 = vmatprep.subr.bf16.mxu0 0
  %715 = vmatpush2.bf16.msra.mxu0 0
  %716 = vmatprep.subr.bf16.mxu0 0
  %717 = vmatpush2.bf16.msra.mxu0 0
  %718 = vmatprep.mubr.bf16.mxu0 0
  %719 = vmatmul.mubr.bf16.gmra.mxu0 %v422
  %v720 = vpop.f32.mrf.mxu0
  %v721 = vadd.f32 %v624, %v720
  %v722 = vpop.f32.mrf.mxu0
  %v723 = vpop.f32.mrf.mxu0
  %v724 = vadd.f32 %v627, %v723
  %v725 = vpop.f32.mrf.mxu0
  %726 = vmatprep.mubr.bf16.mxu0 0
  %727 = vmatmul.mubr.bf16.gmra.mxu0 %v423
  %v728 = vpop.f32.mrf.mxu0
  %v729 = vadd.f32 %v632, %v728
  %v730 = vpop.f32.mrf.mxu0
  %v731 = vpop.f32.mrf.mxu0
  %v732 = vadd.f32 %v635, %v731
  %v733 = vpop.f32.mrf.mxu0
  %734 = vdwg.mxu0
  %v735 = vld [vmem:[#allocation2] sm:$0xe]
  %v736 = vld [vmem:[#allocation2 + $0x4] sm:$0xf]
  %v737 = vld [vmem:[#allocation2 + $0x8] sm:$0x1]
  %v738 = vld [vmem:[#allocation2 + $0xc] sm:$0xe]
  %v739 = vld [vmem:[#allocation2 + $0x10] sm:$0xf]
  %v740 = vld [vmem:[#allocation2 + $0x14] sm:$0x1]
  %vm747 = vcmask 1042432
  %vm748 = vcmask 1046532
  %vm749 = vmor %vm747, %vm748
  %v750 = vrot.slane %v735, 5
  %v751 = vrot.slane %v750, 4
  %v752 = vrot.slane %v736, 5
  %v753 = vsel %vm749, %v751, %v752
  %v754 = vrot.slane %v752, 4
  %v755 = vrot.slane %v737, 5
  %v756 = vsel %vm749, %v754, %v755
  %v757 = vrot.slane %v738, 5
  %v758 = vrot.slane %v757, 4
  %v759 = vrot.slane %v739, 5
  %v760 = vsel %vm749, %v758, %v759
  %v761 = vrot.slane %v759, 4
  %v762 = vrot.slane %v740, 5
  %v763 = vsel %vm749, %v761, %v762
  %s764 = scalar_lea.vmem %s2, 128
  %v765 = vld [vmem:[%s764] sm:$0xf]
  %v766 = vld [vmem:[%s764 + $0x4] sm:$0xf]
  %v767 = vld [vmem:[%s764 + $0x8] sm:$0xf]
  %v768 = vld [vmem:[%s764 + $0xc] sm:$0xf]
  %v769 = vld [vmem:[%s764 + $0x10] sm:$0xf]
  %v770 = vld [vmem:[%s764 + $0x14] sm:$0xf]
  %v771 = vld [vmem:[%s764 + $0x18] sm:$0xf]
  %v772 = vld [vmem:[%s764 + $0x1c] sm:$0xf]
  %v773 = vld [vmem:[%s764 + $0x20] sm:$0xf]
  %v774 = vld [vmem:[%s764 + $0x24] sm:$0xf]
  %v775 = vld [vmem:[%s764 + $0x28] sm:$0xf]
  %v776 = vld [vmem:[%s764 + $0x2c] sm:$0xf]
  %v777 = vld [vmem:[%s764 + $0x30] sm:$0xf]
  %v778 = vld [vmem:[%s764 + $0x34] sm:$0xf]
  %v779 = vld [vmem:[%s764 + $0x38] sm:$0xf]
  %v780 = vld [vmem:[%s764 + $0x3c] sm:$0xf]
  %v781 = vunpack.c.l.b16 %v753
  %v782 = vunpack.c.l.b16 %v756
  %v783 = vunpack.c.l.b16 %v760
  %v784 = vunpack.c.l.b16 %v763
  %v785 = vpack.c.b16 %v782, %v781
  %v786 = vpack.c.b16 %v784, %v783
  %v805 = vunpack.c.l.b16 %v765
  %v806 = vunpack.c.l.b16 %v766
  %v807 = vunpack.c.l.b16 %v767
  %v808 = vunpack.c.l.b16 %v768
  %v809 = vunpack.c.l.b16 %v769
  %v810 = vunpack.c.l.b16 %v770
  %v811 = vunpack.c.l.b16 %v771
  %v812 = vunpack.c.l.b16 %v772
  %v813 = vunpack.c.l.b16 %v773
  %v814 = vunpack.c.l.b16 %v774
  %v815 = vunpack.c.l.b16 %v775
  %v816 = vunpack.c.l.b16 %v776
  %v817 = vunpack.c.l.b16 %v777
  %v818 = vunpack.c.l.b16 %v778
  %v819 = vunpack.c.l.b16 %v779
  %v820 = vunpack.c.l.b16 %v780
  %v821 = vpack.c.b16 %v806, %v805
  %v822 = vpack.c.b16 %v808, %v807
  %v823 = vpack.c.b16 %v810, %v809
  %v824 = vpack.c.b16 %v812, %v811
  %v825 = vpack.c.b16 %v814, %v813
  %v826 = vpack.c.b16 %v816, %v815
  %v827 = vpack.c.b16 %v818, %v817
  %v828 = vpack.c.b16 %v820, %v819
  %837 = vmatprep.subr.bf16.mxu0 0
  %838 = vmatpush1.bf16.msra.mxu0 %v828
  %839 = vmatprep.subr.bf16.mxu0 0
  %840 = vmatpush1.bf16.msra.mxu0 %v827
  %841 = vmatprep.subr.bf16.mxu0 0
  %842 = vmatpush1.bf16.msra.mxu0 %v826
  %843 = vmatprep.subr.bf16.mxu0 0
  %844 = vmatpush1.bf16.msra.mxu0 %v825
  %845 = vmatprep.subr.bf16.mxu0 0
  %846 = vmatpush1.bf16.msra.mxu0 %v824
  %847 = vmatprep.subr.bf16.mxu0 0
  %848 = vmatpush1.bf16.msra.mxu0 %v823
  %849 = vmatprep.subr.bf16.mxu0 0
  %850 = vmatpush1.bf16.msra.mxu0 %v822
  %851 = vmatprep.subr.bf16.mxu0 0
  %852 = vmatpush1.bf16.msra.mxu0 %v821
  %853 = vmatprep.subr.bf16.mxu0 0
  %854 = vmatpush2.bf16.msra.mxu0 0
  %855 = vmatprep.subr.bf16.mxu0 0
  %856 = vmatpush2.bf16.msra.mxu0 0
  %857 = vmatprep.subr.bf16.mxu0 0
  %858 = vmatpush2.bf16.msra.mxu0 0
  %859 = vmatprep.subr.bf16.mxu0 0
  %860 = vmatpush2.bf16.msra.mxu0 0
  %861 = vmatprep.subr.bf16.mxu0 0
  %862 = vmatpush2.bf16.msra.mxu0 0
  %863 = vmatprep.subr.bf16.mxu0 0
  %864 = vmatpush2.bf16.msra.mxu0 0
  %865 = vmatprep.subr.bf16.mxu0 0
  %866 = vmatpush2.bf16.msra.mxu0 0
  %867 = vmatprep.subr.bf16.mxu0 0
  %868 = vmatpush2.bf16.msra.mxu0 0
  %869 = vmatprep.mubr.bf16.mxu0 0
  %870 = vmatmul.mubr.bf16.gmra.mxu0 %v785
  %v871 = vpop.f32.mrf.mxu0
  %v872 = vadd.f32 0.0, %v871
  %v873 = vpop.f32.mrf.mxu0
  %v874 = vpop.f32.mrf.mxu0
  %v875 = vadd.f32 0.0, %v874
  %v876 = vpop.f32.mrf.mxu0
  %877 = vmatprep.mubr.bf16.mxu0 0
  %878 = vmatmul.mubr.bf16.gmra.mxu0 %v786
  %v879 = vpop.f32.mrf.mxu0
  %v880 = vadd.f32 0.0, %v879
  %v881 = vpop.f32.mrf.mxu0
  %v882 = vpop.f32.mrf.mxu0
  %v883 = vadd.f32 0.0, %v882
  %v884 = vpop.f32.mrf.mxu0
  %885 = vdwg.mxu0
  %v886 = vadd.f32 %v721, %v872
  %v887 = vadd.f32 %v724, %v875
  %v888 = vadd.f32 %v729, %v880
  %v889 = vadd.f32 %v732, %v883
  %v890 = vlaneseq
  %v891 = vshrl.u32 %v890, 7
  %v892 = vsub.s32 0, %v891
  %v893 = vrot.slane %v37, %v892
  %v894 = vmul.f32 %v886, %v893
  %v895 = vmul.f32 %v887, %v893
  %v896 = vmul.f32 %v888, %v893
  %v897 = vmul.f32 %v889, %v893
  %v898 = vlaneseq
  %v899 = vshrl.u32 %v898, 7
  %v900 = vsub.s32 0, %v899
  %v901 = vrot.slane %v38, %v900
  %v902 = vadd.f32 %v894, %v901
  %v903 = vadd.f32 %v895, %v901
  %v904 = vadd.f32 %v896, %v901
  %v905 = vadd.f32 %v897, %v901
  %v906 = vadd.f32 %v902, %v39
  %v907 = vadd.f32 %v903, %v40
  %v908 = vadd.f32 %v904, %v41
  %v909 = vadd.f32 %v905, %v42
  %v910 = vmax.f32 %v906, 0.0
  %v911 = vmax.f32 %v907, 0.0
  %v912 = vmax.f32 %v908, 0.0
  %v913 = vmax.f32 %v909, 0.0
  %914 = vst [vmem:[%s4] sm:$0xff] %v910
  %915 = vst [vmem:[%s4 + $0x8] sm:$0xff] %v911
  %916 = vst [vmem:[%s4 + $0x10] sm:$0xff] %v912
  %917 = vst [vmem:[%s4 + $0x18] sm:$0xff] %v913
  // Predicated region
  $region18: #{residual_block_nchw.1} parent=0 // pred_check
    _
  $region19: #{residual_block_nchw.1} parent=0 // pred_check_branch
    %919 = sbr.rel (0) target = $region21
  $region20: #{residual_block_nchw.1} parent=0 // pred_region
    _
  $region21: #{residual_block_nchw.1} parent=0 // pred_fallthru
    _
  // Predicated region
  $region22: #{residual_block_nchw.1} parent=0 // pred_check
    _
  $region23: #{residual_block_nchw.1} parent=0 // pred_check_branch
    %921 = sbr.rel (0) target = $region25
  $region24: #{residual_block_nchw.1} parent=0 // pred_region
    _
  $region25: #{residual_block_nchw.1} parent=0 // pred_fallthru
    _

</llo_original>
